<compile_context>
chip_gen: v7x
topology: tpu7x:2x2x1
jax: 0.10.0
libtpu: 0.0.40
codegen_flags: <defaults>
</compile_context>

<pallas_src>
import functools

import jax
import jax.numpy as jnp
from jax.experimental import pallas as pl
from jax.experimental.pallas import tpu as pltpu


def _message_mlp_kernel(h_ref, s_ref, w1_ref, b1_ref, w2_ref, b2_ref,
                        w3_ref, b3_ref, out_ref):
    """One packed row-tile of the fused concat + 3-layer MLP.

    h_ref : (tm_p, P*hid) f32  packed hidden states (P logical rows / row)
    s_ref : (tm_p, P*3)   f32  packed scalars [b_in, b_out, J] per sub-row
    w*    : block-diagonal bf16 weights; b*: tiled f32 biases
    out   : (tm_p, P*5)   f32
    """
    # Fused concat along lanes (h block ends exactly on a 128-lane boundary),
    # then one bf16 cast for the MXU.  Scalars share the layer-1 contraction,
    # so there is no extra MXU pass for them.
    x1 = jnp.concatenate([h_ref[...], s_ref[...]], axis=1).astype(jnp.bfloat16)

    h1 = jnp.dot(x1, w1_ref[...], preferred_element_type=jnp.float32)
    h1 = jnp.maximum(h1 + b1_ref[...], 0.0)                      # (tm_p, P*64)

    h2 = jnp.dot(h1.astype(jnp.bfloat16), w2_ref[...],
                 preferred_element_type=jnp.float32)
    h2 = jnp.maximum(h2 + b2_ref[...], 0.0)                      # (tm_p, P*64)

    o = jnp.dot(h2.astype(jnp.bfloat16), w3_ref[...],
                preferred_element_type=jnp.float32)
    out_ref[...] = (o + b3_ref[...]).astype(out_ref.dtype)       # (tm_p, P*5)


def _block_diag(w, p):
    """(k, n) -> (p*k, p*n) block-diagonal replication of w."""
    k, n = w.shape
    eye = jnp.eye(p, dtype=w.dtype)
    return (eye[:, None, :, None] * w[None, :, None, :]).reshape(p * k, p * n)


def _round_up(x, m):
    return ((x + m - 1) // m) * m


@functools.partial(jax.jit, static_argnames=("max_tile_rows",))
def message_forward(h, J, b_in, b_out, params, max_tile_rows=4096):
    """Pallas equivalent of Message.forward.

    h:            (N, E, hidden_dim) float32
    J,b_in,b_out: (N, E, 1)          float32
    returns:      (N, E, 5)          float32
    """
    w1, b1, w2, b2, w3, b3 = params
    N, E, hid = h.shape
    M = N * E
    d1 = w2.shape[0]          # 64
    d_out = w3.shape[1]       # 5

    # ---- packing factor P: pack P logical rows per physical row.
    P = 1
    for cand in (4, 2, 1):
        if M % cand == 0:
            P = cand
            break
    MP = M // P

    # ---- fused concat / +/-J fold in the weights.
    #      concat order in the module is [h | b_in | b_out | J | -J], so the
    #      effective J row is W1[hid+2] - W1[hid+3] (exact, folded in f32).
    w1_h = w1[:hid]                                                    # (hid, 64)
    w1_s = jnp.stack([w1[hid], w1[hid + 1], w1[hid + 2] - w1[hid + 3]], axis=0)
    w1_blk = jnp.concatenate([_block_diag(w1_h, P), _block_diag(w1_s, P)],
                             axis=0).astype(jnp.bfloat16)              # (P*(hid+3), P*64)
    w2_blk = _block_diag(w2, P).astype(jnp.bfloat16)                   # (P*64, P*64)
    w3_blk = _block_diag(w3, P).astype(jnp.bfloat16)                   # (P*64, P*5)
    b1_blk = jnp.tile(b1, P).reshape(1, P * d1).astype(jnp.float32)
    b2_blk = jnp.tile(b2, P).reshape(1, P * d1).astype(jnp.float32)
    b3_blk = jnp.tile(b3, P).reshape(1, P * d_out).astype(jnp.float32)

    # ---- inputs: h stays f32 (cast to bf16 inside the kernel -> no extra HBM
    #      cast pass); the packed reshape is a free contiguous view.
    h_pk = h.reshape(MP, P * hid)                                      # (M/P, P*hid) f32
    s_pk = jnp.concatenate([b_in, b_out, J], axis=2).reshape(MP, P * 3)
    s_pk = s_pk.astype(jnp.float32)                                    # (M/P, P*3) f32

    # ---- tiling over packed rows.
    #      Small problems: a single grid step (best on single-TC v5e/v6e,
    #      negligible cost on v7x at these sizes).  Large problems: ~1024
    #      packed rows per tile (>=4096 logical rows) with an even step count
    #      so v7x's two TensorCores split the grid evenly; ragged last tile is
    #      masked by Pallas (no row padding).
    bytes_per_packed_row = P * hid * 4
    max_tile_p = max(8, min(1024, max_tile_rows // P,
                            (2 * 1024 * 1024) // bytes_per_packed_row))
    if MP <= max_tile_p:
        tile_p = MP
        grid = (1,)
    else:
        steps = 2 * pl.cdiv(MP, 2 * max_tile_p)
        tile_p = _round_up(pl.cdiv(MP, steps), 8)
        grid = (pl.cdiv(MP, tile_p),)

    out = pl.pallas_call(
        _message_mlp_kernel,
        out_shape=jax.ShapeDtypeStruct((MP, P * d_out), jnp.float32),
        grid_spec=pltpu.PrefetchScalarGridSpec(
            num_scalar_prefetch=0,
            grid=grid,
            in_specs=[
                pl.BlockSpec((tile_p, P * hid), lambda i: (i, 0)),       # packed h (f32)
                pl.BlockSpec((tile_p, P * 3), lambda i: (i, 0)),         # packed scalars
                pl.BlockSpec((P * (hid + 3), P * d1), lambda i: (0, 0)), # W1 block-diag
                pl.BlockSpec((1, P * d1), lambda i: (0, 0)),             # b1
                pl.BlockSpec((P * d1, P * d1), lambda i: (0, 0)),        # W2 block-diag
                pl.BlockSpec((1, P * d1), lambda i: (0, 0)),             # b2
                pl.BlockSpec((P * d1, P * d_out), lambda i: (0, 0)),     # W3 block-diag
                pl.BlockSpec((1, P * d_out), lambda i: (0, 0)),          # b3
            ],
            out_specs=pl.BlockSpec((tile_p, P * d_out), lambda i: (i, 0)),
        ),
        compiler_params=pltpu.CompilerParams(
            dimension_semantics=("parallel",)),
    )(h_pk, s_pk, w1_blk, b1_blk, w2_blk, b2_blk, w3_blk, b3_blk)

    # (M/P, P*5) -> (N, E, 5) is a free row-major view (no slice pass).
    return out.reshape(N, E, d_out)


def init_message_params(hidden_dim, key):
    """Deterministic parameter init matching nn.Linear shapes (stored as (in, out))."""
    d_in = hidden_dim + 4
    dims = [(d_in, 64), (64, 64), (64, 5)]
    params = []
    for i, (fi, fo) in enumerate(dims):
        k_w, k_b = jax.random.split(jax.random.fold_in(key, i))
        bound = 1.0 / jnp.sqrt(jnp.float32(fi))
        w = jax.random.uniform(k_w, (fi, fo), jnp.float32, -bound, bound)
        b = jax.random.uniform(k_b, (fo,), jnp.float32, -bound, bound)
        params += [w, b]
    return tuple(params)


def _reference_forward(h, J, b_in, b_out, params):
    """Pure-JAX f32 reference matching the PyTorch module exactly."""
    w1, b1, w2, b2, w3, b3 = params
    x = jnp.concatenate([h, b_in, b_out, J, -J], axis=2)
    a = jnp.maximum(x @ w1 + b1, 0.0)
    a = jnp.maximum(a @ w2 + b2, 0.0)
    return a @ w3 + b3


def _reference_forward_bf16(h, J, b_in, b_out, params):
    """Reference mirroring the kernel's bf16-input / f32-accumulate math."""
    w1, b1, w2, b2, w3, b3 = params
    hid = h.shape[-1]
    bf = jnp.bfloat16
    w1_eff = jnp.concatenate(
        [w1[:hid], w1[hid:hid + 2], (w1[hid + 2] - w1[hid + 3])[None, :]], axis=0)
    x = jnp.concatenate([h, b_in, b_out, J], axis=2)
    a = jnp.dot(x.astype(bf), w1_eff.astype(bf),
                preferred_element_type=jnp.float32) + b1
    a = jnp.maximum(a, 0.0)
    a = jnp.dot(a.astype(bf), w2.astype(bf),
                preferred_element_type=jnp.float32) + b2
    a = jnp.maximum(a, 0.0)
    return jnp.dot(a.astype(bf), w3.astype(bf),
                   preferred_element_type=jnp.float32) + b3


if __name__ == "__main__":
    key = jax.random.PRNGKey(0)
    hidden_dim = 32
    N, E = 2, 8                      # e.g. 2 graphs, 8 edges each

    k_h, k_j, k_bi, k_bo, k_p = jax.random.split(key, 5)
    h = jax.random.normal(k_h, (N, E, hidden_dim), jnp.float32)
    J = jax.random.normal(k_j, (N, E, 1), jnp.float32)
    b_in = jax.random.normal(k_bi, (N, E, 1), jnp.float32)
    b_out = jax.random.normal(k_bo, (N, E, 1), jnp.float32)

    params = init_message_params(hidden_dim, k_p)

    out = jax.block_until_ready(message_forward(h, J, b_in, b_out, params))

    ref_f32 = _reference_forward(h, J, b_in, b_out, params)
    ref_bf16 = _reference_forward_bf16(h, J, b_in, b_out, params)

    assert out.shape == (N, E, 5), out.shape
    # Tight check against a reference using the same bf16-input/f32-accum math.
    assert jnp.allclose(out, ref_bf16, atol=1e-2, rtol=1e-2), "mismatch vs bf16 reference"
    # Looser check against the exact f32 PyTorch-equivalent math (bf16 rounding
    # of h and the b_in/b_out/J features is the only deviation; documented).
    assert jnp.allclose(out, ref_f32, atol=1e-1, rtol=1e-1), "mismatch vs f32 reference"

    print("KERNEL_OK")
</pallas_src>

<mosaic_0001>
module attributes {stable_mosaic.version = 11 : i64} {
  func.func @_message_mlp_kernel(%arg0: i32, %arg1: memref<4x128xf32, #tpu.memory_space<vmem>>, %arg2: memref<4x12xf32, #tpu.memory_space<vmem>>, %arg3: memref<140x256xbf16, #tpu.memory_space<vmem>>, %arg4: memref<1x256xf32, #tpu.memory_space<vmem>>, %arg5: memref<256x256xbf16, #tpu.memory_space<vmem>>, %arg6: memref<1x256xf32, #tpu.memory_space<vmem>>, %arg7: memref<256x20xbf16, #tpu.memory_space<vmem>>, %arg8: memref<1x20xf32, #tpu.memory_space<vmem>>, %arg9: memref<4x20xf32, #tpu.memory_space<vmem>>) attributes {dimension_semantics = [#tpu.dimension_semantics<parallel>], iteration_bounds = array<i64: 1>, scalar_prefetch = 0 : i64, scratch_operands = 0 : i64, tpu.core_type = #tpu.core_type<tc>, window_params = [{transform_indices = @transform_0, window_bounds = array<i64: 4, 128>}, {transform_indices = @transform_1, window_bounds = array<i64: 4, 12>}, {pipeline_mode = #tpu.pipeline_mode<synchronous>, transform_indices = @transform_2, window_bounds = array<i64: 140, 256>}, {pipeline_mode = #tpu.pipeline_mode<synchronous>, transform_indices = @transform_3, window_bounds = array<i64: 1, 256>}, {pipeline_mode = #tpu.pipeline_mode<synchronous>, transform_indices = @transform_4, window_bounds = array<i64: 256, 256>}, {pipeline_mode = #tpu.pipeline_mode<synchronous>, transform_indices = @transform_5, window_bounds = array<i64: 1, 256>}, {pipeline_mode = #tpu.pipeline_mode<synchronous>, transform_indices = @transform_6, window_bounds = array<i64: 256, 20>}, {pipeline_mode = #tpu.pipeline_mode<synchronous>, transform_indices = @transform_7, window_bounds = array<i64: 1, 20>}, {transform_indices = @transform_8, window_bounds = array<i64: 4, 20>}]} {
    %c0 = arith.constant 0 : index
    %c0_0 = arith.constant 0 : index
    %0 = vector.load %arg1[%c0, %c0_0] : memref<4x128xf32, #tpu.memory_space<vmem>>, vector<4x128xf32>
    %c0_1 = arith.constant 0 : index
    %c0_2 = arith.constant 0 : index
    %1 = vector.load %arg2[%c0_1, %c0_2] : memref<4x12xf32, #tpu.memory_space<vmem>>, vector<4x12xf32>
    %2 = tpu.concatenate %0, %1 in 1 : vector<4x128xf32>, vector<4x12xf32> -> vector<4x140xf32>
    %3 = arith.truncf %2 : vector<4x140xf32> to vector<4x140xbf16>
    %c0_3 = arith.constant 0 : index
    %c0_4 = arith.constant 0 : index
    %4 = vector.load %arg3[%c0_3, %c0_4] : memref<140x256xbf16, #tpu.memory_space<vmem>>, vector<140x256xbf16>
    %cst = arith.constant dense<0.000000e+00> : vector<4x256xf32>
    %5 = tpu.matmul %3, %4, %cst {dimension_numbers = #tpu.dot_dimension_numbers<[1], [0], [0], [1], [0, 0, 1, 1], [], []>} : vector<4x140xbf16>, vector<140x256xbf16>, vector<4x256xf32> -> vector<4x256xf32>
    %c0_5 = arith.constant 0 : index
    %c0_6 = arith.constant 0 : index
    %6 = vector.load %arg4[%c0_5, %c0_6] : memref<1x256xf32, #tpu.memory_space<vmem>>, vector<1x256xf32>
    %7 = vector.broadcast %6 : vector<1x256xf32> to vector<4x256xf32>
    %8 = arith.addf %5, %7 : vector<4x256xf32>
    %cst_7 = arith.constant 0.000000e+00 : f32
    %9 = vector.broadcast %cst_7 : f32 to vector<4x256xf32>
    %10 = arith.maximumf %8, %9 : vector<4x256xf32>
    %11 = arith.truncf %10 : vector<4x256xf32> to vector<4x256xbf16>
    %c0_8 = arith.constant 0 : index
    %c0_9 = arith.constant 0 : index
    %12 = vector.load %arg5[%c0_8, %c0_9] : memref<256x256xbf16, #tpu.memory_space<vmem>>, vector<256x256xbf16>
    %cst_10 = arith.constant dense<0.000000e+00> : vector<4x256xf32>
    %13 = tpu.matmul %11, %12, %cst_10 {dimension_numbers = #tpu.dot_dimension_numbers<[1], [0], [0], [1], [0, 0, 1, 1], [], []>} : vector<4x256xbf16>, vector<256x256xbf16>, vector<4x256xf32> -> vector<4x256xf32>
    %c0_11 = arith.constant 0 : index
    %c0_12 = arith.constant 0 : index
    %14 = vector.load %arg6[%c0_11, %c0_12] : memref<1x256xf32, #tpu.memory_space<vmem>>, vector<1x256xf32>
    %15 = vector.broadcast %14 : vector<1x256xf32> to vector<4x256xf32>
    %16 = arith.addf %13, %15 : vector<4x256xf32>
    %cst_13 = arith.constant 0.000000e+00 : f32
    %17 = vector.broadcast %cst_13 : f32 to vector<4x256xf32>
    %18 = arith.maximumf %16, %17 : vector<4x256xf32>
    %19 = arith.truncf %18 : vector<4x256xf32> to vector<4x256xbf16>
    %c0_14 = arith.constant 0 : index
    %c0_15 = arith.constant 0 : index
    %20 = vector.load %arg7[%c0_14, %c0_15] : memref<256x20xbf16, #tpu.memory_space<vmem>>, vector<256x20xbf16>
    %cst_16 = arith.constant dense<0.000000e+00> : vector<4x20xf32>
    %21 = tpu.matmul %19, %20, %cst_16 {dimension_numbers = #tpu.dot_dimension_numbers<[1], [0], [0], [1], [0, 0, 1, 1], [], []>} : vector<4x256xbf16>, vector<256x20xbf16>, vector<4x20xf32> -> vector<4x20xf32>
    %c0_17 = arith.constant 0 : index
    %c0_18 = arith.constant 0 : index
    %22 = vector.load %arg8[%c0_17, %c0_18] : memref<1x20xf32, #tpu.memory_space<vmem>>, vector<1x20xf32>
    %23 = vector.broadcast %22 : vector<1x20xf32> to vector<4x20xf32>
    %24 = arith.addf %21, %23 : vector<4x20xf32>
    %c0_19 = arith.constant 0 : index
    %c0_20 = arith.constant 0 : index
    %25 = vector.load %arg9[%c0_19, %c0_20] : memref<4x20xf32, #tpu.memory_space<vmem>>, vector<4x20xf32>
    tpu.vector_store %arg9[%c0_19, %c0_20], %24 {strides = array<i32>} : memref<4x20xf32, #tpu.memory_space<vmem>>, vector<4x20xf32>,
    return
  }
  func.func @transform_0(%arg0: i32) -> (i32, i32) {
    %c0_i32 = arith.constant 0 : i32
    %c0_i32_0 = arith.constant 0 : i32
    return %arg0, %c0_i32 : i32, i32
  }
  func.func @transform_1(%arg0: i32) -> (i32, i32) {
    %c0_i32 = arith.constant 0 : i32
    %c0_i32_0 = arith.constant 0 : i32
    return %arg0, %c0_i32 : i32, i32
  }
  func.func @transform_2(%arg0: i32) -> (i32, i32) {
    %c0_i32 = arith.constant 0 : i32
    %c0_i32_0 = arith.constant 0 : i32
    %c0_i32_1 = arith.constant 0 : i32
    return %c0_i32, %c0_i32_0 : i32, i32
  }
  func.func @transform_3(%arg0: i32) -> (i32, i32) {
    %c0_i32 = arith.constant 0 : i32
    %c0_i32_0 = arith.constant 0 : i32
    %c0_i32_1 = arith.constant 0 : i32
    return %c0_i32, %c0_i32_0 : i32, i32
  }
  func.func @transform_4(%arg0: i32) -> (i32, i32) {
    %c0_i32 = arith.constant 0 : i32
    %c0_i32_0 = arith.constant 0 : i32
    %c0_i32_1 = arith.constant 0 : i32
    return %c0_i32, %c0_i32_0 : i32, i32
  }
  func.func @transform_5(%arg0: i32) -> (i32, i32) {
    %c0_i32 = arith.constant 0 : i32
    %c0_i32_0 = arith.constant 0 : i32
    %c0_i32_1 = arith.constant 0 : i32
    return %c0_i32, %c0_i32_0 : i32, i32
  }
  func.func @transform_6(%arg0: i32) -> (i32, i32) {
    %c0_i32 = arith.constant 0 : i32
    %c0_i32_0 = arith.constant 0 : i32
    %c0_i32_1 = arith.constant 0 : i32
    return %c0_i32, %c0_i32_0 : i32, i32
  }
  func.func @transform_7(%arg0: i32) -> (i32, i32) {
    %c0_i32 = arith.constant 0 : i32
    %c0_i32_0 = arith.constant 0 : i32
    %c0_i32_1 = arith.constant 0 : i32
    return %c0_i32, %c0_i32_0 : i32, i32
  }
  func.func @transform_8(%arg0: i32) -> (i32, i32) {
    %c0_i32 = arith.constant 0 : i32
    %c0_i32_0 = arith.constant 0 : i32
    return %arg0, %c0_i32 : i32, i32
  }
}

</mosaic_0001>

<llo_original>
// kernel: tile.18
$region0: #{tile.18}
  #allocation0 [shape = 's32[1]{0}', space=sflag, size = 0x4, scoped, tag = 'scoped memory for tile.18']
  %s0 = inlined_call_operand.vmem [shape: f32[64], index: 0, kind: input, shape index: {}]
  %s1 = inlined_call_operand.vmem [shape: f32[4,64], index: 1, kind: output, shape index: {}]
  // Predicated region
  $region2: #{tile.18} parent=0 // pred_check
    _
  $region3: #{tile.18} parent=0 // pred_check_branch
    %3 = sbr.rel (0) target = $region5
  $region4: #{tile.18} parent=0 // pred_region
    _
  $region5: #{tile.18} parent=0 // pred_fallthru
    _
  %v4 = vld [vmem:[%s0] ss:$0 sm:$0xff]
  %5 = vst [vmem:[%s1] sm:$0xf] %v4

// kernel: tile.19
$region0: #{tile.19}
  %s0 = inlined_call_operand.vmem [shape: f32[4,64], index: 0, kind: input, shape index: {}]
  %s1 = inlined_call_operand.vmem [shape: f32[1,256], index: 1, kind: output, shape index: {}]
  $region1: #{tile.19} parent=0
    #allocation0 [shape = 'u8[8192]{0}', space=vmem, size = 0x2000, scoped, tag = 'scoped mem for output reshape']
    #allocation1 [shape = 'u8[4096]{0}', space=vmem, size = 0x1000, scoped, tag = 'scoped mem for input reshape']
    %s3 = sshllo.u32 0, 4
    %v4 = vld [vmem:[%s0] sm:%s3]
    %5 = vst [vmem:[#allocation1] sm:%s3] %v4
    %s6 = smov 3
    %v7 = vld [vmem:[#allocation1] ss:$2 sm:%s6]
    %vm8 = vcmask 523264
    %9 = vst.msk [vmem:[#allocation0] ss:$8 sm:$0x3] %vm8, %v7
    %s10 = scalar_lea.vmem [#allocation1], 1
    %s11 = smov 3
    %v12 = vld [vmem:[%s10] ss:$2 sm:%s11]
    %13 = vrot.lane.b32.xlu0 %v12, 64
    %v14 = vpop.permute.xlu0 %13
    %vm15 = vcmask 1048064
    %16 = vst.msk [vmem:[#allocation0] ss:$8 sm:$0x3] %vm15, %v14
    %s18 = sshllo.u32 0, 1
    %v20 = vld [vmem:[#allocation0] sm:%s18]
    %s21 = sshllo.u32 0, 1
    %22 = vst [vmem:[%s1] sm:%s21] %v20
    %s23 = scalar_lea.vmem [#allocation0], 8
    %v24 = vld [vmem:[%s23] sm:%s18]
    %s25 = sshllo.u32 0, 1
    %s26 = scalar_lea.vmem %s1, 1
    %27 = vst [vmem:[%s26] sm:%s25] %v24

// kernel: tile.28
$region0: #{tile.28}
  #allocation0 [shape = 's32[1]{0}', space=sflag, size = 0x4, scoped, tag = 'scoped memory for tile.28']
  %s0 = inlined_call_operand.vmem [shape: f32[5], index: 0, kind: input, shape index: {}]
  %s1 = inlined_call_operand.vmem [shape: f32[4,5], index: 1, kind: output, shape index: {}]
  // Predicated region
  $region2: #{tile.28} parent=0 // pred_check
    _
  $region3: #{tile.28} parent=0 // pred_check_branch
    %3 = sbr.rel (0) target = $region5
  $region4: #{tile.28} parent=0 // pred_region
    _
  $region5: #{tile.28} parent=0 // pred_fallthru
    _
  %v4 = vld [vmem:[%s0] ss:$0 sm:$0xff]
  %5 = vst [vmem:[%s1] sm:$0xf] %v4

// kernel: tile.29
$region0: #{tile.29}
  %s0 = inlined_call_operand.vmem [shape: f32[4,5], index: 0, kind: input, shape index: {}]
  %s1 = inlined_call_operand.vmem [shape: f32[1,20], index: 1, kind: output, shape index: {}]
  $region1: #{tile.29} parent=0
    #allocation0 [shape = 'u8[4096]{0}', space=vmem, size = 0x1000, scoped, tag = 'scoped mem for output reshape']
    #allocation1 [shape = 'u8[4096]{0}', space=vmem, size = 0x1000, scoped, tag = 'scoped mem for input reshape']
    %s3 = sshllo.u32 0, 4
    %v4 = vld [vmem:[%s0] sm:%s3]
    %5 = vst [vmem:[#allocation1] sm:%s3] %v4
    %v6 = vld [vmem:[#allocation1] sm:$0x1]
    %vm7 = vcmask 39936
    %8 = vst.msk [vmem:[#allocation0] sm:$0x1] %vm7, %v6
    %s9 = scalar_lea.vmem [#allocation1], 3
    %v10 = vld [vmem:[%s9] sm:$0x1]
    %11 = vrot.lane.b32.xlu0 %v10, 15
    %v12 = vpop.permute.xlu0 %11
    %vm13 = vcmask 162936
    %14 = vst.msk [vmem:[#allocation0] sm:$0x1] %vm13, %v12
    %s15 = scalar_lea.vmem [#allocation1], 2
    %v16 = vld [vmem:[%s15] sm:$0x1]
    %17 = vrot.lane.b32.xlu0 %v16, 10
    %v18 = vpop.permute.xlu0 %17
    %vm19 = vcmask 121936
    %20 = vst.msk [vmem:[#allocation0] sm:$0x1] %vm19, %v18
    %s21 = scalar_lea.vmem [#allocation1], 1
    %v22 = vld [vmem:[%s21] sm:$0x1]
    %23 = vrot.lane.b32.xlu0 %v22, 5
    %v24 = vpop.permute.xlu0 %23
    %vm25 = vcmask 80936
    %26 = vst.msk [vmem:[#allocation0] sm:$0x1] %vm25, %v24
    %s28 = sshllo.u32 0, 1
    %v30 = vld [vmem:[#allocation0] sm:%s28]
    %s31 = sshllo.u32 0, 1
    %32 = vst [vmem:[%s1] sm:%s31] %v30

// kernel: message_forward.1
$region0: #{message_forward.1}
  #allocation0 [shape = 'u32[]', space=smem, size = 0x4, offset = 0x4, fixed_abs, tag = 'smem constant byte address 0x4 - core index']
  #allocation1 [shape = 'u32[144,128]{1,0:T(1,128)}', space=vmem, size = 0x12000, scoped, tag = 'internal scratch']
  %s0 = inlined_call_operand.vmem [shape: f32[4,128], index: 0, kind: input, shape index: {}]
  %s1 = inlined_call_operand.vmem [shape: f32[4,12], index: 1, kind: input, shape index: {}]
  %s2 = inlined_call_operand.vmem [shape: bf16[140,256], index: 2, kind: input, shape index: {}]
  %s3 = inlined_call_operand.vmem [shape: f32[1,256], index: 3, kind: input, shape index: {}]
  %s4 = inlined_call_operand.vmem [shape: bf16[256,256], index: 4, kind: input, shape index: {}]
  %s5 = inlined_call_operand.vmem [shape: f32[1,256], index: 5, kind: input, shape index: {}]
  %s6 = inlined_call_operand.vmem [shape: bf16[256,20], index: 6, kind: input, shape index: {}]
  %s7 = inlined_call_operand.vmem [shape: f32[1,20], index: 7, kind: input, shape index: {}]
  %s8 = inlined_call_operand.vmem [shape: f32[4,20], index: 8, kind: output, shape index: {}]
  %s9 = sld [smem:[#allocation0]]
  $region42: #{message_forward.1} parent=0
    _
  %s11 = ssub.s32 1, %s9
  %s12 = scalar_select 0, %s11, %s9
  // Predicated region
  $region2: #{message_forward.1} parent=0 // pred_check
    _
  $region3: #{message_forward.1} parent=0 // pred_check_branch
    %14 = sbr.rel (0) target = $region5
  $region4: #{message_forward.1} parent=0 // pred_region
    _
  $region5: #{message_forward.1} parent=0 // pred_fallthru
    _
  // Predicated region
  $region6: #{message_forward.1} parent=0 // pred_check
    _
  $region7: #{message_forward.1} parent=0 // pred_check_branch
    %16 = sbr.rel (0) target = $region9
  $region8: #{message_forward.1} parent=0 // pred_region
    _
  $region9: #{message_forward.1} parent=0 // pred_fallthru
    _
  // Predicated region
  $region10: #{message_forward.1} parent=0 // pred_check
    _
  $region11: #{message_forward.1} parent=0 // pred_check_branch
    %18 = sbr.rel (0) target = $region13
  $region12: #{message_forward.1} parent=0 // pred_region
    _
  $region13: #{message_forward.1} parent=0 // pred_fallthru
    _
  // Predicated region
  $region14: #{message_forward.1} parent=0 // pred_check
    _
  $region15: #{message_forward.1} parent=0 // pred_check_branch
    %20 = sbr.rel (0) target = $region17
  $region16: #{message_forward.1} parent=0 // pred_region
    _
  $region17: #{message_forward.1} parent=0 // pred_fallthru
    _
  // Predicated region
  $region18: #{message_forward.1} parent=0 // pred_check
    _
  $region19: #{message_forward.1} parent=0 // pred_check_branch
    %22 = sbr.rel (0) target = $region21
  $region20: #{message_forward.1} parent=0 // pred_region
    _
  $region21: #{message_forward.1} parent=0 // pred_fallthru
    _
  // Predicated region
  $region22: #{message_forward.1} parent=0 // pred_check
    _
  $region23: #{message_forward.1} parent=0 // pred_check_branch
    %24 = sbr.rel (0) target = $region25
  $region24: #{message_forward.1} parent=0 // pred_region
    _
  $region25: #{message_forward.1} parent=0 // pred_fallthru
    _
  // Predicated region
  $region26: #{message_forward.1} parent=0 // pred_check
    _
  $region27: #{message_forward.1} parent=0 // pred_check_branch
    %26 = sbr.rel (0) target = $region29
  $region28: #{message_forward.1} parent=0 // pred_region
    _
  $region29: #{message_forward.1} parent=0 // pred_fallthru
    _
  // Predicated region
  $region30: #{message_forward.1} parent=0 // pred_check
    _
  $region31: #{message_forward.1} parent=0 // pred_check_branch
    %28 = sbr.rel (0) target = $region33
  $region32: #{message_forward.1} parent=0 // pred_region
    _
  $region33: #{message_forward.1} parent=0 // pred_fallthru
    _
  %v30 = vld [vmem:[%s0] sm:$0xf]
  %v31 = vld [vmem:[%s1] sm:$0xf]
  %v32 = vpack.c.bf16 %v30, %v30
  %v33 = vpack.c.bf16 %v31, %v31
  %v34 = vld [vmem:[%s2] sm:$0xff]
  %v35 = vld [vmem:[%s2 + $0x8] sm:$0xff]
  %v36 = vld [vmem:[%s2 + $0x10] sm:$0xff]
  %v37 = vld [vmem:[%s2 + $0x18] sm:$0xff]
  %v38 = vld [vmem:[%s2 + $0x20] sm:$0xff]
  %v39 = vld [vmem:[%s2 + $0x28] sm:$0xff]
  %v40 = vld [vmem:[%s2 + $0x30] sm:$0xff]
  %v41 = vld [vmem:[%s2 + $0x38] sm:$0xff]
  %v42 = vld [vmem:[%s2 + $0x40] sm:$0xff]
  %v43 = vld [vmem:[%s2 + $0x48] sm:$0xff]
  %v44 = vld [vmem:[%s2 + $0x50] sm:$0xff]
  %v45 = vld [vmem:[%s2 + $0x58] sm:$0xff]
  %v46 = vld [vmem:[%s2 + $0x60] sm:$0xff]
  %v47 = vld [vmem:[%s2 + $0x68] sm:$0xff]
  %v48 = vld [vmem:[%s2 + $0x70] sm:$0xff]
  %v49 = vld [vmem:[%s2 + $0x78] sm:$0xff]
  %v50 = vld [vmem:[%s2 + $0x80] sm:$0xff]
  %v51 = vld [vmem:[%s2 + $0x88] sm:$0x33]
  %v52 = vld [vmem:[%s3] sm:$0x3]
  %v54 = vlaneseq
  %v55 = vshrl.u32 %v54, 7
  %v56 = vsub.s32 0, %v55
  %v57 = vrot.slane %v52, %v56
  %v58 = vlaneseq
  %v59 = vshrl.u32 %v58, 7
  %v60 = vsub.s32 1, %v59
  %v61 = vrot.slane %v52, %v60
  %v82 = vunpack.c.l.b16 %v34
  %v83 = vunpack.c.h.b16 %v34
  %v84 = vunpack.c.l.b16 %v35
  %v85 = vunpack.c.h.b16 %v35
  %v86 = vunpack.c.l.b16 %v36
  %v87 = vunpack.c.h.b16 %v36
  %v88 = vunpack.c.l.b16 %v37
  %v89 = vunpack.c.h.b16 %v37
  %v90 = vunpack.c.l.b16 %v38
  %v91 = vunpack.c.h.b16 %v38
  %v92 = vunpack.c.l.b16 %v39
  %v93 = vunpack.c.h.b16 %v39
  %v94 = vunpack.c.l.b16 %v40
  %v95 = vunpack.c.h.b16 %v40
  %v96 = vunpack.c.l.b16 %v41
  %v97 = vunpack.c.h.b16 %v41
  %v98 = vunpack.c.l.b16 %v42
  %v99 = vunpack.c.h.b16 %v42
  %v100 = vunpack.c.l.b16 %v43
  %v101 = vunpack.c.h.b16 %v43
  %v102 = vunpack.c.l.b16 %v44
  %v103 = vunpack.c.h.b16 %v44
  %v104 = vunpack.c.l.b16 %v45
  %v105 = vunpack.c.h.b16 %v45
  %v106 = vunpack.c.l.b16 %v46
  %v107 = vunpack.c.h.b16 %v46
  %v108 = vunpack.c.l.b16 %v47
  %v109 = vunpack.c.h.b16 %v47
  %v110 = vunpack.c.l.b16 %v48
  %v111 = vunpack.c.h.b16 %v48
  %v112 = vunpack.c.l.b16 %v49
  %v113 = vunpack.c.h.b16 %v49
  %v114 = vunpack.c.l.b16 %v50
  %v115 = vunpack.c.h.b16 %v50
  %v116 = vunpack.c.l.b16 %v51
  %v117 = vunpack.c.h.b16 %v51
  %v118 = vpack.c.b16 %v84, %v82
  %v119 = vpack.c.b16 %v85, %v83
  %v120 = vpack.c.b16 %v88, %v86
  %v121 = vpack.c.b16 %v89, %v87
  %v122 = vpack.c.b16 %v92, %v90
  %v123 = vpack.c.b16 %v93, %v91
  %v124 = vpack.c.b16 %v96, %v94
  %v125 = vpack.c.b16 %v97, %v95
  %v126 = vpack.c.b16 %v100, %v98
  %v127 = vpack.c.b16 %v101, %v99
  %v128 = vpack.c.b16 %v104, %v102
  %v129 = vpack.c.b16 %v105, %v103
  %v130 = vpack.c.b16 %v108, %v106
  %v131 = vpack.c.b16 %v109, %v107
  %v132 = vpack.c.b16 %v112, %v110
  %v133 = vpack.c.b16 %v113, %v111
  %v134 = vpack.c.b16 %v116, %v114
  %v135 = vpack.c.b16 %v117, %v115
  %vm152 = vcmask 97280
  %v154 = vsel %vm152, %v33, 0
  %vm156 = vcmask 1045504
  %v158 = vsel %vm156, %v134, 0
  %v161 = vsel %vm156, %v135, 0
  %163 = vmatprep.subr.bf16.mxu0 %v119
  %164 = vmatpush1.bf16.msra.mxu0 %v118
  %165 = vmatprep.subr.bf16.mxu0 %v121
  %166 = vmatpush1.bf16.msra.mxu0 %v120
  %167 = vmatprep.subr.bf16.mxu0 %v123
  %168 = vmatpush1.bf16.msra.mxu0 %v122
  %169 = vmatprep.subr.bf16.mxu0 %v125
  %170 = vmatpush1.bf16.msra.mxu0 %v124
  %171 = vmatprep.subr.bf16.mxu0 %v127
  %172 = vmatpush1.bf16.msra.mxu0 %v126
  %173 = vmatprep.subr.bf16.mxu0 %v129
  %174 = vmatpush1.bf16.msra.mxu0 %v128
  %175 = vmatprep.subr.bf16.mxu0 %v131
  %176 = vmatpush1.bf16.msra.mxu0 %v130
  %177 = vmatprep.subr.bf16.mxu0 %v133
  %178 = vmatpush1.bf16.msra.mxu0 %v132
  %179 = vmatprep.subr.bf16.mxu0 %v161
  %180 = vmatpush1.bf16.msra.mxu0 %v158
  %181 = vmatprep.subr.bf16.mxu0 0
  %182 = vmatpush1.bf16.msra.mxu0 0
  %183 = vmatprep.subr.bf16.mxu0 0
  %184 = vmatpush1.bf16.msra.mxu0 0
  %185 = vmatprep.subr.bf16.mxu0 0
  %186 = vmatpush1.bf16.msra.mxu0 0
  %187 = vmatprep.subr.bf16.mxu0 0
  %188 = vmatpush1.bf16.msra.mxu0 0
  %189 = vmatprep.subr.bf16.mxu0 0
  %190 = vmatpush1.bf16.msra.mxu0 0
  %191 = vmatprep.subr.bf16.mxu0 0
  %192 = vmatpush1.bf16.msra.mxu0 0
  %193 = vmatprep.subr.bf16.mxu0 0
  %194 = vmatpush1.bf16.msra.mxu0 0
  %195 = vmatprep.mubr.bf16.mxu0 %v154
  %196 = vmatmul.mubr.bf16.gmra.mrb[0].mxu0 %v32
  %v197 = vpop.f32.mrb[0].mxu0
  %v198 = vadd.f32 %v57, %v197
  %v199 = vpop.f32.mrb[0].mxu0
  %v200 = vadd.f32 %v61, %v199
  %v201 = vpop.f32.mrb[0].mxu0
  %v202 = vpop.f32.mrb[0].mxu0
  %203 = vdwg.mxu0
  %v204 = vmax.f32 %v198, 0.0
  %v205 = vmax.f32 %v200, 0.0
  %v206 = vpack.c.bf16 %v204, %v204
  %v207 = vpack.c.bf16 %v205, %v205
  %v208 = vld [vmem:[%s4] sm:$0xff]
  %v209 = vld [vmem:[%s4 + $0x8] sm:$0xff]
  %v210 = vld [vmem:[%s4 + $0x10] sm:$0xff]
  %v211 = vld [vmem:[%s4 + $0x18] sm:$0xff]
  %v212 = vld [vmem:[%s4 + $0x20] sm:$0xff]
  %v213 = vld [vmem:[%s4 + $0x28] sm:$0xff]
  %v214 = vld [vmem:[%s4 + $0x30] sm:$0xff]
  %v215 = vld [vmem:[%s4 + $0x38] sm:$0xff]
  %v216 = vld [vmem:[%s4 + $0x40] sm:$0xff]
  %v217 = vld [vmem:[%s4 + $0x48] sm:$0xff]
  %v218 = vld [vmem:[%s4 + $0x50] sm:$0xff]
  %v219 = vld [vmem:[%s4 + $0x58] sm:$0xff]
  %v220 = vld [vmem:[%s4 + $0x60] sm:$0xff]
  %v221 = vld [vmem:[%s4 + $0x68] sm:$0xff]
  %v222 = vld [vmem:[%s4 + $0x70] sm:$0xff]
  %v223 = vld [vmem:[%s4 + $0x78] sm:$0xff]
  %v224 = vld [vmem:[%s4 + $0x80] sm:$0xff]
  %v225 = vld [vmem:[%s4 + $0x88] sm:$0xff]
  %v226 = vld [vmem:[%s4 + $0x90] sm:$0xff]
  %v227 = vld [vmem:[%s4 + $0x98] sm:$0xff]
  %v228 = vld [vmem:[%s4 + $0xa0] sm:$0xff]
  %v229 = vld [vmem:[%s4 + $0xa8] sm:$0xff]
  %v230 = vld [vmem:[%s4 + $0xb0] sm:$0xff]
  %v231 = vld [vmem:[%s4 + $0xb8] sm:$0xff]
  %v232 = vld [vmem:[%s4 + $0xc0] sm:$0xff]
  %v233 = vld [vmem:[%s4 + $0xc8] sm:$0xff]
  %v234 = vld [vmem:[%s4 + $0xd0] sm:$0xff]
  %v235 = vld [vmem:[%s4 + $0xd8] sm:$0xff]
  %v236 = vld [vmem:[%s4 + $0xe0] sm:$0xff]
  %v237 = vld [vmem:[%s4 + $0xe8] sm:$0xff]
  %v238 = vld [vmem:[%s4 + $0xf0] sm:$0xff]
  %v239 = vld [vmem:[%s4 + $0xf8] sm:$0xff]
  %v240 = vld [vmem:[%s5] sm:$0x3]
  %v242 = vlaneseq
  %v243 = vshrl.u32 %v242, 7
  %v244 = vsub.s32 0, %v243
  %v245 = vrot.slane %v240, %v244
  %v246 = vlaneseq
  %v247 = vshrl.u32 %v246, 7
  %v248 = vsub.s32 1, %v247
  %v249 = vrot.slane %v240, %v248
  %v284 = vunpack.c.l.b16 %v208
  %v285 = vunpack.c.h.b16 %v208
  %v286 = vunpack.c.l.b16 %v209
  %v287 = vunpack.c.h.b16 %v209
  %v288 = vunpack.c.l.b16 %v210
  %v289 = vunpack.c.h.b16 %v210
  %v290 = vunpack.c.l.b16 %v211
  %v291 = vunpack.c.h.b16 %v211
  %v292 = vunpack.c.l.b16 %v212
  %v293 = vunpack.c.h.b16 %v212
  %v294 = vunpack.c.l.b16 %v213
  %v295 = vunpack.c.h.b16 %v213
  %v296 = vunpack.c.l.b16 %v214
  %v297 = vunpack.c.h.b16 %v214
  %v298 = vunpack.c.l.b16 %v215
  %v299 = vunpack.c.h.b16 %v215
  %v300 = vunpack.c.l.b16 %v216
  %v301 = vunpack.c.h.b16 %v216
  %v302 = vunpack.c.l.b16 %v217
  %v303 = vunpack.c.h.b16 %v217
  %v304 = vunpack.c.l.b16 %v218
  %v305 = vunpack.c.h.b16 %v218
  %v306 = vunpack.c.l.b16 %v219
  %v307 = vunpack.c.h.b16 %v219
  %v308 = vunpack.c.l.b16 %v220
  %v309 = vunpack.c.h.b16 %v220
  %v310 = vunpack.c.l.b16 %v221
  %v311 = vunpack.c.h.b16 %v221
  %v312 = vunpack.c.l.b16 %v222
  %v313 = vunpack.c.h.b16 %v222
  %v314 = vunpack.c.l.b16 %v223
  %v315 = vunpack.c.h.b16 %v223
  %v316 = vunpack.c.l.b16 %v224
  %v317 = vunpack.c.h.b16 %v224
  %v318 = vunpack.c.l.b16 %v225
  %v319 = vunpack.c.h.b16 %v225
  %v320 = vunpack.c.l.b16 %v226
  %v321 = vunpack.c.h.b16 %v226
  %v322 = vunpack.c.l.b16 %v227
  %v323 = vunpack.c.h.b16 %v227
  %v324 = vunpack.c.l.b16 %v228
  %v325 = vunpack.c.h.b16 %v228
  %v326 = vunpack.c.l.b16 %v229
  %v327 = vunpack.c.h.b16 %v229
  %v328 = vunpack.c.l.b16 %v230
  %v329 = vunpack.c.h.b16 %v230
  %v330 = vunpack.c.l.b16 %v231
  %v331 = vunpack.c.h.b16 %v231
  %v332 = vunpack.c.l.b16 %v232
  %v333 = vunpack.c.h.b16 %v232
  %v334 = vunpack.c.l.b16 %v233
  %v335 = vunpack.c.h.b16 %v233
  %v336 = vunpack.c.l.b16 %v234
  %v337 = vunpack.c.h.b16 %v234
  %v338 = vunpack.c.l.b16 %v235
  %v339 = vunpack.c.h.b16 %v235
  %v340 = vunpack.c.l.b16 %v236
  %v341 = vunpack.c.h.b16 %v236
  %v342 = vunpack.c.l.b16 %v237
  %v343 = vunpack.c.h.b16 %v237
  %v344 = vunpack.c.l.b16 %v238
  %v345 = vunpack.c.h.b16 %v238
  %v346 = vunpack.c.l.b16 %v239
  %v347 = vunpack.c.h.b16 %v239
  %v348 = vpack.c.b16 %v286, %v284
  %v349 = vpack.c.b16 %v287, %v285
  %v350 = vpack.c.b16 %v290, %v288
  %v351 = vpack.c.b16 %v291, %v289
  %v352 = vpack.c.b16 %v294, %v292
  %v353 = vpack.c.b16 %v295, %v293
  %v354 = vpack.c.b16 %v298, %v296
  %v355 = vpack.c.b16 %v299, %v297
  %v356 = vpack.c.b16 %v302, %v300
  %v357 = vpack.c.b16 %v303, %v301
  %v358 = vpack.c.b16 %v306, %v304
  %v359 = vpack.c.b16 %v307, %v305
  %v360 = vpack.c.b16 %v310, %v308
  %v361 = vpack.c.b16 %v311, %v309
  %v362 = vpack.c.b16 %v314, %v312
  %v363 = vpack.c.b16 %v315, %v313
  %v364 = vpack.c.b16 %v318, %v316
  %v365 = vpack.c.b16 %v319, %v317
  %v366 = vpack.c.b16 %v322, %v320
  %v367 = vpack.c.b16 %v323, %v321
  %v368 = vpack.c.b16 %v326, %v324
  %v369 = vpack.c.b16 %v327, %v325
  %v370 = vpack.c.b16 %v330, %v328
  %v371 = vpack.c.b16 %v331, %v329
  %v372 = vpack.c.b16 %v334, %v332
  %v373 = vpack.c.b16 %v335, %v333
  %v374 = vpack.c.b16 %v338, %v336
  %v375 = vpack.c.b16 %v339, %v337
  %v376 = vpack.c.b16 %v342, %v340
  %v377 = vpack.c.b16 %v343, %v341
  %v378 = vpack.c.b16 %v346, %v344
  %v379 = vpack.c.b16 %v347, %v345
  %412 = vmatprep.subr.bf16.mxu0 %v349
  %413 = vmatpush1.bf16.msra.mxu0 %v348
  %414 = vmatprep.subr.bf16.mxu0 %v351
  %415 = vmatpush1.bf16.msra.mxu0 %v350
  %416 = vmatprep.subr.bf16.mxu0 %v353
  %417 = vmatpush1.bf16.msra.mxu0 %v352
  %418 = vmatprep.subr.bf16.mxu0 %v355
  %419 = vmatpush1.bf16.msra.mxu0 %v354
  %420 = vmatprep.subr.bf16.mxu0 %v357
  %421 = vmatpush1.bf16.msra.mxu0 %v356
  %422 = vmatprep.subr.bf16.mxu0 %v359
  %423 = vmatpush1.bf16.msra.mxu0 %v358
  %424 = vmatprep.subr.bf16.mxu0 %v361
  %425 = vmatpush1.bf16.msra.mxu0 %v360
  %426 = vmatprep.subr.bf16.mxu0 %v363
  %427 = vmatpush1.bf16.msra.mxu0 %v362
  %428 = vmatprep.subr.bf16.mxu0 %v365
  %429 = vmatpush1.bf16.msra.mxu0 %v364
  %430 = vmatprep.subr.bf16.mxu0 %v367
  %431 = vmatpush1.bf16.msra.mxu0 %v366
  %432 = vmatprep.subr.bf16.mxu0 %v369
  %433 = vmatpush1.bf16.msra.mxu0 %v368
  %434 = vmatprep.subr.bf16.mxu0 %v371
  %435 = vmatpush1.bf16.msra.mxu0 %v370
  %436 = vmatprep.subr.bf16.mxu0 %v373
  %437 = vmatpush1.bf16.msra.mxu0 %v372
  %438 = vmatprep.subr.bf16.mxu0 %v375
  %439 = vmatpush1.bf16.msra.mxu0 %v374
  %440 = vmatprep.subr.bf16.mxu0 %v377
  %441 = vmatpush1.bf16.msra.mxu0 %v376
  %442 = vmatprep.subr.bf16.mxu0 %v379
  %443 = vmatpush1.bf16.msra.mxu0 %v378
  %444 = vmatprep.mubr.bf16.mxu0 %v207
  %445 = vmatmul.mubr.bf16.gmra.mrb[0].mxu0 %v206
  %v446 = vpop.f32.mrb[0].mxu0
  %v447 = vadd.f32 %v245, %v446
  %v448 = vpop.f32.mrb[0].mxu0
  %v449 = vadd.f32 %v249, %v448
  %v450 = vpop.f32.mrb[0].mxu0
  %v451 = vpop.f32.mrb[0].mxu0
  %452 = vdwg.mxu0
  %v453 = vmax.f32 %v447, 0.0
  %v454 = vmax.f32 %v449, 0.0
  %v455 = vpack.c.bf16 %v453, %v453
  %v456 = vpack.c.bf16 %v454, %v454
  %v457 = vld [vmem:[%s6] sm:$0xf]
  %v458 = vld [vmem:[%s6 + $0x4] sm:$0xf]
  %v459 = vld [vmem:[%s6 + $0x8] sm:$0xf]
  %v460 = vld [vmem:[%s6 + $0xc] sm:$0xf]
  %v461 = vld [vmem:[%s6 + $0x10] sm:$0xf]
  %v462 = vld [vmem:[%s6 + $0x14] sm:$0xf]
  %v463 = vld [vmem:[%s6 + $0x18] sm:$0xf]
  %v464 = vld [vmem:[%s6 + $0x1c] sm:$0xf]
  %v465 = vld [vmem:[%s6 + $0x20] sm:$0xf]
  %v466 = vld [vmem:[%s6 + $0x24] sm:$0xf]
  %v467 = vld [vmem:[%s6 + $0x28] sm:$0xf]
  %v468 = vld [vmem:[%s6 + $0x2c] sm:$0xf]
  %v469 = vld [vmem:[%s6 + $0x30] sm:$0xf]
  %v470 = vld [vmem:[%s6 + $0x34] sm:$0xf]
  %v471 = vld [vmem:[%s6 + $0x38] sm:$0xf]
  %v472 = vld [vmem:[%s6 + $0x3c] sm:$0xf]
  %v473 = vld [vmem:[%s6 + $0x40] sm:$0xf]
  %v474 = vld [vmem:[%s6 + $0x44] sm:$0xf]
  %v475 = vld [vmem:[%s6 + $0x48] sm:$0xf]
  %v476 = vld [vmem:[%s6 + $0x4c] sm:$0xf]
  %v477 = vld [vmem:[%s6 + $0x50] sm:$0xf]
  %v478 = vld [vmem:[%s6 + $0x54] sm:$0xf]
  %v479 = vld [vmem:[%s6 + $0x58] sm:$0xf]
  %v480 = vld [vmem:[%s6 + $0x5c] sm:$0xf]
  %v481 = vld [vmem:[%s6 + $0x60] sm:$0xf]
  %v482 = vld [vmem:[%s6 + $0x64] sm:$0xf]
  %v483 = vld [vmem:[%s6 + $0x68] sm:$0xf]
  %v484 = vld [vmem:[%s6 + $0x6c] sm:$0xf]
  %v485 = vld [vmem:[%s6 + $0x70] sm:$0xf]
  %v486 = vld [vmem:[%s6 + $0x74] sm:$0xf]
  %v487 = vld [vmem:[%s6 + $0x78] sm:$0xf]
  %v488 = vld [vmem:[%s6 + $0x7c] sm:$0xf]
  %v489 = vld [vmem:[%s7] sm:$0x1]
  %v491 = vlaneseq
  %v492 = vshrl.u32 %v491, 7
  %v493 = vsub.s32 0, %v492
  %v494 = vrot.slane %v489, %v493
  %v528 = vunpack.c.l.b16 %v457
  %v529 = vunpack.c.l.b16 %v458
  %v530 = vunpack.c.l.b16 %v459
  %v531 = vunpack.c.l.b16 %v460
  %v532 = vunpack.c.l.b16 %v461
  %v533 = vunpack.c.l.b16 %v462
  %v534 = vunpack.c.l.b16 %v463
  %v535 = vunpack.c.l.b16 %v464
  %v536 = vunpack.c.l.b16 %v465
  %v537 = vunpack.c.l.b16 %v466
  %v538 = vunpack.c.l.b16 %v467
  %v539 = vunpack.c.l.b16 %v468
  %v540 = vunpack.c.l.b16 %v469
  %v541 = vunpack.c.l.b16 %v470
  %v542 = vunpack.c.l.b16 %v471
  %v543 = vunpack.c.l.b16 %v472
  %v544 = vunpack.c.l.b16 %v473
  %v545 = vunpack.c.l.b16 %v474
  %v546 = vunpack.c.l.b16 %v475
  %v547 = vunpack.c.l.b16 %v476
  %v548 = vunpack.c.l.b16 %v477
  %v549 = vunpack.c.l.b16 %v478
  %v550 = vunpack.c.l.b16 %v479
  %v551 = vunpack.c.l.b16 %v480
  %v552 = vunpack.c.l.b16 %v481
  %v553 = vunpack.c.l.b16 %v482
  %v554 = vunpack.c.l.b16 %v483
  %v555 = vunpack.c.l.b16 %v484
  %v556 = vunpack.c.l.b16 %v485
  %v557 = vunpack.c.l.b16 %v486
  %v558 = vunpack.c.l.b16 %v487
  %v559 = vunpack.c.l.b16 %v488
  %v560 = vpack.c.b16 %v529, %v528
  %v561 = vpack.c.b16 %v531, %v530
  %v562 = vpack.c.b16 %v533, %v532
  %v563 = vpack.c.b16 %v535, %v534
  %v564 = vpack.c.b16 %v537, %v536
  %v565 = vpack.c.b16 %v539, %v538
  %v566 = vpack.c.b16 %v541, %v540
  %v567 = vpack.c.b16 %v543, %v542
  %v568 = vpack.c.b16 %v545, %v544
  %v569 = vpack.c.b16 %v547, %v546
  %v570 = vpack.c.b16 %v549, %v548
  %v571 = vpack.c.b16 %v551, %v550
  %v572 = vpack.c.b16 %v553, %v552
  %v573 = vpack.c.b16 %v555, %v554
  %v574 = vpack.c.b16 %v557, %v556
  %v575 = vpack.c.b16 %v559, %v558
  %592 = vmatprep.subr.bf16.mxu0 0
  %593 = vmatpush1.bf16.msra.mxu0 %v560
  %594 = vmatprep.subr.bf16.mxu0 0
  %595 = vmatpush1.bf16.msra.mxu0 %v561
  %596 = vmatprep.subr.bf16.mxu0 0
  %597 = vmatpush1.bf16.msra.mxu0 %v562
  %598 = vmatprep.subr.bf16.mxu0 0
  %599 = vmatpush1.bf16.msra.mxu0 %v563
  %600 = vmatprep.subr.bf16.mxu0 0
  %601 = vmatpush1.bf16.msra.mxu0 %v564
  %602 = vmatprep.subr.bf16.mxu0 0
  %603 = vmatpush1.bf16.msra.mxu0 %v565
  %604 = vmatprep.subr.bf16.mxu0 0
  %605 = vmatpush1.bf16.msra.mxu0 %v566
  %606 = vmatprep.subr.bf16.mxu0 0
  %607 = vmatpush1.bf16.msra.mxu0 %v567
  %608 = vmatprep.subr.bf16.mxu0 0
  %609 = vmatpush1.bf16.msra.mxu0 %v568
  %610 = vmatprep.subr.bf16.mxu0 0
  %611 = vmatpush1.bf16.msra.mxu0 %v569
  %612 = vmatprep.subr.bf16.mxu0 0
  %613 = vmatpush1.bf16.msra.mxu0 %v570
  %614 = vmatprep.subr.bf16.mxu0 0
  %615 = vmatpush1.bf16.msra.mxu0 %v571
  %616 = vmatprep.subr.bf16.mxu0 0
  %617 = vmatpush1.bf16.msra.mxu0 %v572
  %618 = vmatprep.subr.bf16.mxu0 0
  %619 = vmatpush1.bf16.msra.mxu0 %v573
  %620 = vmatprep.subr.bf16.mxu0 0
  %621 = vmatpush1.bf16.msra.mxu0 %v574
  %622 = vmatprep.subr.bf16.mxu0 0
  %623 = vmatpush1.bf16.msra.mxu0 %v575
  %624 = vmatprep.mubr.bf16.mxu0 %v456
  %625 = vmatmul.mubr.bf16.gmra.mrb[0].mxu0 %v455
  %v626 = vpop.f32.mrb[0].mxu0
  %v627 = vadd.f32 %v494, %v626
  %v628 = vpop.f32.mrb[0].mxu0
  %v629 = vpop.f32.mrb[0].mxu0
  %v630 = vpop.f32.mrb[0].mxu0
  %631 = vdwg.mxu0
  %vm632 = vcmask 158720
  %633 = vst.msk [vmem:[%s8] sm:$0xf] %vm632, %v627
  // Predicated region
  $region34: #{message_forward.1} parent=0 // pred_check
    _
  $region35: #{message_forward.1} parent=0 // pred_check_branch
    %635 = sbr.rel (0) target = $region37
  $region36: #{message_forward.1} parent=0 // pred_region
    _
  $region37: #{message_forward.1} parent=0 // pred_fallthru
    _
  // Predicated region
  $region38: #{message_forward.1} parent=0 // pred_check
    _
  $region39: #{message_forward.1} parent=0 // pred_check_branch
    %637 = sbr.rel (0) target = $region41
  $region40: #{message_forward.1} parent=0 // pred_region
    _
  $region41: #{message_forward.1} parent=0 // pred_fallthru
    _

</llo_original>
